<compile_context>
chip_gen: v7x
topology: tpu7x:2x2x1
jax: 0.10.0
libtpu: 0.0.40
codegen_flags: <defaults>
</compile_context>

<pallas_src>
import functools

import jax
import jax.numpy as jnp
from jax.experimental import pallas as pl
from jax.experimental.pallas import tpu as pltpu


def _dwsep_kernel(x_ref, dww_ref, dwb_ref, pww_ref, pwb_ref, o_ref, *,
                  K, P, H, W, use_mxu):
    """Fused depthwise + pointwise conv for one batch element.

    x_ref  : (1, Cin, H*W)   input (NCHW, spatial flattened onto lanes)
    dww_ref: (Cin, K*K)      depthwise weights (one KxK filter per channel)
    dwb_ref: (Cin, 1)        depthwise bias
    pww_ref: (Cout, Cin)     pointwise (1x1) weights
    pwb_ref: (Cout, 1)       pointwise bias
    o_ref  : (1, Cout, H*W)  output (lane-dense: last dim = H*W)
    """
    HW = H * W
    x = x_ref[0].astype(jnp.float32)                 # (Cin, H*W)
    dww = dww_ref[...].astype(jnp.float32)
    dwb = dwb_ref[...].astype(jnp.float32)
    pww = pww_ref[...].astype(jnp.float32)
    pwb = pwb_ref[...].astype(jnp.float32)
    cin = dww.shape[0]
    cout = pww.shape[0]

    # ---- hoisted pixel-index vectors (shape (1, HW); broadcast over Cin) ----
    lane = jax.lax.broadcasted_iota(jnp.int32, (1, HW), 1)
    col = lane % W

    # ---- K column-shifted, column-masked copies of x (shared by all rows) ----
    # Each copy costs one lane roll (XLU) + one select; K-1 non-trivial rolls.
    xc = []
    for kw in range(K):
        dx = kw - P
        t = x if dx == 0 else pltpu.roll(x, (-dx) % HW, axis=1)
        if dx > 0:
            t = jnp.where(col < W - dx, t, 0.0)
        elif dx < 0:
            t = jnp.where(col >= -dx, t, 0.0)
        xc.append(t)

    # ---- depthwise KxK conv ----
    # For each kernel row dy: accumulate the K column taps with per-channel
    # weights (pure VPU FMAs), then apply a single row shift (lane roll by
    # dy*W) + row mask.  Total rolls: 2*(K-1) instead of K*K-1.
    acc = jnp.zeros((cin, HW), jnp.float32)
    for kh in range(K):
        dy = kh - P
        row_acc = dww[:, kh * K:kh * K + 1] * xc[0]
        for kw in range(1, K):
            t = kh * K + kw
            row_acc = row_acc + dww[:, t:t + 1] * xc[kw]
        if dy != 0:
            row_acc = pltpu.roll(row_acc, (-dy * W) % HW, axis=1)
            if dy > 0:
                row_acc = jnp.where(lane < (H - dy) * W, row_acc, 0.0)
            else:
                row_acc = jnp.where(lane >= (-dy) * W, row_acc, 0.0)
        acc = acc + row_acc
    dw = jnp.maximum(acc + dwb, 0.0)                 # bias + ReLU, (Cin, H*W)

    # ---- pointwise 1x1 conv ----
    if use_mxu:
        # Production channel counts: ride the otherwise-idle MXU.
        out = jnp.dot(pww, dw, preferred_element_type=jnp.float32)
    else:
        # Tiny Cin/Cout (toy 4x8 config): Cin rank-1 FMA passes on the VPU.
        out = pww[:, 0:1] * dw[0:1, :]
        for ci in range(1, cin):
            out = out + pww[:, ci:ci + 1] * dw[ci:ci + 1, :]
    out = jnp.maximum(out + pwb, 0.0)                # bias + ReLU, (Cout, H*W)

    o_ref[0] = out.astype(o_ref.dtype)


def dwsep_conv_module(x_nchw, dw_w, dw_b, pw_w, pw_b, *, padding=1):
    """x_nchw: (N, Cin, H, W); dw_w: (Cin, 1, K, K); pw_w: (Cout, Cin, 1, 1).
    stride=1, dilation=1, 'same' spatial padding (module defaults as used)."""
    N, Cin, H, W = x_nchw.shape
    K = dw_w.shape[-1]
    Cout = pw_w.shape[0]
    if 2 * padding != K - 1:
        raise NotImplementedError(
            "kernel supports stride=1, dilation=1, 'same' padding (2*padding == K-1)")
    HW = H * W

    # Pure-metadata reshapes only -- no transposes, no jnp.pad HBM round trips.
    x = x_nchw.reshape(N, Cin, HW)
    dww = dw_w.reshape(Cin, K * K)
    dwb = dw_b.reshape(Cin, 1)
    pww = pw_w.reshape(Cout, Cin)
    pwb = pw_b.reshape(Cout, 1)

    # Pointwise conv on the MXU only when the channel counts can fill it.
    use_mxu = (Cin >= 32) and (Cout >= 32)

    kernel = functools.partial(_dwsep_kernel, K=K, P=padding, H=H, W=W,
                               use_mxu=use_mxu)

    # TODO(synk): for production sizes add a second (parallel) grid axis over
    # output-row tiles with a +/-padding halo and set vmem_limit_bytes so the
    # double-buffered blocks fit v7x's 64 MiB VMEM; pad H*W up to a multiple
    # of 128 when it isn't one, and carry activations as bf16 in HBM.
    out = pl.pallas_call(
        kernel,
        out_shape=jax.ShapeDtypeStruct((N, Cout, HW), x_nchw.dtype),
        grid=(N,),
        in_specs=[
            pl.BlockSpec((1, Cin, HW), lambda i: (i, 0, 0)),
            pl.BlockSpec((Cin, K * K), lambda i: (0, 0)),
            pl.BlockSpec((Cin, 1), lambda i: (0, 0)),
            pl.BlockSpec((Cout, Cin), lambda i: (0, 0)),
            pl.BlockSpec((Cout, 1), lambda i: (0, 0)),
        ],
        out_specs=pl.BlockSpec((1, Cout, HW), lambda i: (i, 0, 0)),
        compiler_params=pltpu.CompilerParams(
            dimension_semantics=("parallel",)),
    )(x, dww, dwb, pww, pwb)

    return out.reshape(N, Cout, H, W)


def _reference(x, dw_w, dw_b, pw_w, pw_b, padding):
    """Pure-JAX reference (lax conv) for correctness check."""
    y = jax.lax.conv_general_dilated(
        x, dw_w, window_strides=(1, 1),
        padding=[(padding, padding), (padding, padding)],
        feature_group_count=x.shape[1],
        dimension_numbers=("NCHW", "OIHW", "NCHW"))
    y = jax.nn.relu(y + dw_b[None, :, None, None])
    z = jax.lax.conv_general_dilated(
        y, pw_w, window_strides=(1, 1), padding="VALID",
        dimension_numbers=("NCHW", "OIHW", "NCHW"))
    z = jax.nn.relu(z + pw_b[None, :, None, None])
    return z


if __name__ == "__main__":
    # Module config: in_channels=4, out_channels=8, kernel_size=3, padding=1.
    N, Cin, H, W = 2, 4, 16, 16
    Cout, K, PAD = 8, 3, 1

    key = jax.random.PRNGKey(0)
    k0, k1, k2, k3, k4 = jax.random.split(key, 5)

    x = jax.random.normal(k0, (N, Cin, H, W), dtype=jnp.float32)
    # PyTorch parameter shapes: dw conv weight (Cin, 1, K, K), pw conv weight (Cout, Cin, 1, 1).
    dw_w = jax.random.normal(k1, (Cin, 1, K, K), dtype=jnp.float32) * 0.1
    dw_b = jax.random.normal(k2, (Cin,), dtype=jnp.float32) * 0.1
    pw_w = jax.random.normal(k3, (Cout, Cin, 1, 1), dtype=jnp.float32) * 0.1
    pw_b = jax.random.normal(k4, (Cout,), dtype=jnp.float32) * 0.1

    out = dwsep_conv_module(x, dw_w, dw_b, pw_w, pw_b, padding=PAD)
    out = jax.block_until_ready(out)

    ref = _reference(x, dw_w, dw_b, pw_w, pw_b, PAD)
    assert out.shape == (N, Cout, H, W), out.shape
    assert jnp.allclose(out, ref, atol=1e-5, rtol=1e-5), float(jnp.abs(out - ref).max())

    print("KERNEL_OK")
</pallas_src>

<mosaic_0001>
module attributes {stable_mosaic.version = 11 : i64} {
  func.func @_dwsep_kernel(%arg0: i32, %arg1: memref<1x4x256xf32, #tpu.memory_space<vmem>>, %arg2: memref<4x9xf32, #tpu.memory_space<vmem>>, %arg3: memref<4x1xf32, #tpu.memory_space<vmem>>, %arg4: memref<8x4xf32, #tpu.memory_space<vmem>>, %arg5: memref<8x1xf32, #tpu.memory_space<vmem>>, %arg6: memref<1x8x256xf32, #tpu.memory_space<vmem>>) attributes {dimension_semantics = [#tpu.dimension_semantics<parallel>], iteration_bounds = array<i64: 2>, scalar_prefetch = 0 : i64, scratch_operands = 0 : i64, tpu.core_type = #tpu.core_type<tc>, window_params = [{transform_indices = @transform_0, window_bounds = array<i64: 1, 4, 256>}, {pipeline_mode = #tpu.pipeline_mode<synchronous>, transform_indices = @transform_1, window_bounds = array<i64: 4, 9>}, {pipeline_mode = #tpu.pipeline_mode<synchronous>, transform_indices = @transform_2, window_bounds = array<i64: 4, 1>}, {pipeline_mode = #tpu.pipeline_mode<synchronous>, transform_indices = @transform_3, window_bounds = array<i64: 8, 4>}, {pipeline_mode = #tpu.pipeline_mode<synchronous>, transform_indices = @transform_4, window_bounds = array<i64: 8, 1>}, {transform_indices = @transform_5, window_bounds = array<i64: 1, 8, 256>}]} {
    %c0 = arith.constant 0 : index
    %c0_0 = arith.constant 0 : index
    %c0_1 = arith.constant 0 : index
    %0 = vector.load %arg1[%c0, %c0_0, %c0_1] : memref<1x4x256xf32, #tpu.memory_space<vmem>>, vector<1x4x256xf32>
    %1 = vector.shape_cast %0 : vector<1x4x256xf32> to vector<4x256xf32>
    %c0_2 = arith.constant 0 : index
    %c0_3 = arith.constant 0 : index
    %2 = vector.load %arg2[%c0_2, %c0_3] : memref<4x9xf32, #tpu.memory_space<vmem>>, vector<4x9xf32>
    %c0_4 = arith.constant 0 : index
    %c0_5 = arith.constant 0 : index
    %3 = vector.load %arg3[%c0_4, %c0_5] : memref<4x1xf32, #tpu.memory_space<vmem>>, vector<4x1xf32>
    %c0_6 = arith.constant 0 : index
    %c0_7 = arith.constant 0 : index
    %4 = vector.load %arg4[%c0_6, %c0_7] : memref<8x4xf32, #tpu.memory_space<vmem>>, vector<8x4xf32>
    %c0_8 = arith.constant 0 : index
    %c0_9 = arith.constant 0 : index
    %5 = vector.load %arg5[%c0_8, %c0_9] : memref<8x1xf32, #tpu.memory_space<vmem>>, vector<8x1xf32>
    %6 = tpu.iota {dimensions = array<i32: 1>} : vector<1x256xi32>
    %c16_i32 = arith.constant 16 : i32
    %c0_i32 = arith.constant 0 : i32
    %7 = arith.cmpi eq, %c16_i32, %c0_i32 : i32
    %c1_i32 = arith.constant 1 : i32
    %8 = arith.select %7, %c1_i32, %c16_i32 : i32
    %9 = vector.broadcast %8 : i32 to vector<1x256xi32>
    %10 = arith.remsi %6, %9 : vector<1x256xi32>
    %c0_i32_10 = arith.constant 0 : i32
    %11 = vector.broadcast %c0_i32_10 : i32 to vector<1x256xi32>
    %12 = arith.cmpi ne, %10, %11 : vector<1x256xi32>
    %c0_i32_11 = arith.constant 0 : i32
    %13 = vector.broadcast %c0_i32_11 : i32 to vector<1x256xi32>
    %14 = arith.cmpi slt, %10, %13 : vector<1x256xi32>
    %c0_i32_12 = arith.constant 0 : i32
    %15 = arith.cmpi slt, %8, %c0_i32_12 : i32
    %16 = vector.broadcast %15 : i1 to vector<1x256xi1>
    %17 = vector.broadcast %16 : vector<1x256xi1> to vector<1x256xi1>
    %18 = arith.xori %14, %17 : vector<1x256xi1>
    %19 = arith.andi %18, %12 : vector<1x256xi1>
    %20 = vector.broadcast %8 : i32 to vector<1x256xi32>
    %21 = arith.addi %10, %20 : vector<1x256xi32>
    %22 = arith.select %19, %21, %10 : vector<1x256xi1>, vector<1x256xi32>
    %c1_i32_13 = arith.constant 1 : i32
    %23 = tpu.dynamic_rotate %1 by %c1_i32_13 dim 1 : vector<4x256xf32>, i32 -> vector<4x256xf32>
    %c1_i32_14 = arith.constant 1 : i32
    %24 = vector.broadcast %c1_i32_14 : i32 to vector<1x256xi32>
    %25 = arith.cmpi sge, %22, %24 : vector<1x256xi32>
    %cst = arith.constant 0.000000e+00 : f32
    %26 = vector.shape_cast %25 : vector<1x256xi1> to vector<1x256xi1>
    %27 = vector.broadcast %26 : vector<1x256xi1> to vector<4x256xi1>
    %28 = vector.broadcast %cst : f32 to vector<4x256xf32>
    %29 = arith.select %27, %23, %28 : vector<4x256xi1>, vector<4x256xf32>
    %c255_i32 = arith.constant 255 : i32
    %30 = tpu.dynamic_rotate %1 by %c255_i32 dim 1 : vector<4x256xf32>, i32 -> vector<4x256xf32>
    %c15_i32 = arith.constant 15 : i32
    %31 = vector.broadcast %c15_i32 : i32 to vector<1x256xi32>
    %32 = arith.cmpi slt, %22, %31 : vector<1x256xi32>
    %cst_15 = arith.constant 0.000000e+00 : f32
    %33 = vector.shape_cast %32 : vector<1x256xi1> to vector<1x256xi1>
    %34 = vector.broadcast %33 : vector<1x256xi1> to vector<4x256xi1>
    %35 = vector.broadcast %cst_15 : f32 to vector<4x256xf32>
    %36 = arith.select %34, %30, %35 : vector<4x256xi1>, vector<4x256xf32>
    %cst_16 = arith.constant 0.000000e+00 : f32
    %37 = vector.broadcast %cst_16 : f32 to vector<4x256xf32>
    %38 = vector.extract_strided_slice %2 {offsets = [0, 0], sizes = [4, 1], strides = [1, 1]} : vector<4x9xf32> to vector<4x1xf32>
    %39 = vector.broadcast %38 : vector<4x1xf32> to vector<4x256xf32>
    %40 = arith.mulf %39, %29 : vector<4x256xf32>
    %41 = vector.extract_strided_slice %2 {offsets = [0, 1], sizes = [4, 1], strides = [1, 1]} : vector<4x9xf32> to vector<4x1xf32>
    %42 = vector.broadcast %41 : vector<4x1xf32> to vector<4x256xf32>
    %43 = arith.mulf %42, %1 : vector<4x256xf32>
    %44 = arith.addf %40, %43 : vector<4x256xf32>
    %45 = vector.extract_strided_slice %2 {offsets = [0, 2], sizes = [4, 1], strides = [1, 1]} : vector<4x9xf32> to vector<4x1xf32>
    %46 = vector.broadcast %45 : vector<4x1xf32> to vector<4x256xf32>
    %47 = arith.mulf %46, %36 : vector<4x256xf32>
    %48 = arith.addf %44, %47 : vector<4x256xf32>
    %c16_i32_17 = arith.constant 16 : i32
    %49 = tpu.dynamic_rotate %48 by %c16_i32_17 dim 1 : vector<4x256xf32>, i32 -> vector<4x256xf32>
    %c16_i32_18 = arith.constant 16 : i32
    %50 = vector.broadcast %c16_i32_18 : i32 to vector<1x256xi32>
    %51 = arith.cmpi sge, %6, %50 : vector<1x256xi32>
    %cst_19 = arith.constant 0.000000e+00 : f32
    %52 = vector.shape_cast %51 : vector<1x256xi1> to vector<1x256xi1>
    %53 = vector.broadcast %52 : vector<1x256xi1> to vector<4x256xi1>
    %54 = vector.broadcast %cst_19 : f32 to vector<4x256xf32>
    %55 = arith.select %53, %49, %54 : vector<4x256xi1>, vector<4x256xf32>
    %56 = arith.addf %37, %55 : vector<4x256xf32>
    %57 = vector.extract_strided_slice %2 {offsets = [0, 3], sizes = [4, 1], strides = [1, 1]} : vector<4x9xf32> to vector<4x1xf32>
    %58 = vector.broadcast %57 : vector<4x1xf32> to vector<4x256xf32>
    %59 = arith.mulf %58, %29 : vector<4x256xf32>
    %60 = vector.extract_strided_slice %2 {offsets = [0, 4], sizes = [4, 1], strides = [1, 1]} : vector<4x9xf32> to vector<4x1xf32>
    %61 = vector.broadcast %60 : vector<4x1xf32> to vector<4x256xf32>
    %62 = arith.mulf %61, %1 : vector<4x256xf32>
    %63 = arith.addf %59, %62 : vector<4x256xf32>
    %64 = vector.extract_strided_slice %2 {offsets = [0, 5], sizes = [4, 1], strides = [1, 1]} : vector<4x9xf32> to vector<4x1xf32>
    %65 = vector.broadcast %64 : vector<4x1xf32> to vector<4x256xf32>
    %66 = arith.mulf %65, %36 : vector<4x256xf32>
    %67 = arith.addf %63, %66 : vector<4x256xf32>
    %68 = arith.addf %56, %67 : vector<4x256xf32>
    %69 = vector.extract_strided_slice %2 {offsets = [0, 6], sizes = [4, 1], strides = [1, 1]} : vector<4x9xf32> to vector<4x1xf32>
    %70 = vector.broadcast %69 : vector<4x1xf32> to vector<4x256xf32>
    %71 = arith.mulf %70, %29 : vector<4x256xf32>
    %72 = vector.extract_strided_slice %2 {offsets = [0, 7], sizes = [4, 1], strides = [1, 1]} : vector<4x9xf32> to vector<4x1xf32>
    %73 = vector.broadcast %72 : vector<4x1xf32> to vector<4x256xf32>
    %74 = arith.mulf %73, %1 : vector<4x256xf32>
    %75 = arith.addf %71, %74 : vector<4x256xf32>
    %76 = vector.extract_strided_slice %2 {offsets = [0, 8], sizes = [4, 1], strides = [1, 1]} : vector<4x9xf32> to vector<4x1xf32>
    %77 = vector.broadcast %76 : vector<4x1xf32> to vector<4x256xf32>
    %78 = arith.mulf %77, %36 : vector<4x256xf32>
    %79 = arith.addf %75, %78 : vector<4x256xf32>
    %c240_i32 = arith.constant 240 : i32
    %80 = tpu.dynamic_rotate %79 by %c240_i32 dim 1 : vector<4x256xf32>, i32 -> vector<4x256xf32>
    %c240_i32_20 = arith.constant 240 : i32
    %81 = vector.broadcast %c240_i32_20 : i32 to vector<1x256xi32>
    %82 = arith.cmpi slt, %6, %81 : vector<1x256xi32>
    %cst_21 = arith.constant 0.000000e+00 : f32
    %83 = vector.shape_cast %82 : vector<1x256xi1> to vector<1x256xi1>
    %84 = vector.broadcast %83 : vector<1x256xi1> to vector<4x256xi1>
    %85 = vector.broadcast %cst_21 : f32 to vector<4x256xf32>
    %86 = arith.select %84, %80, %85 : vector<4x256xi1>, vector<4x256xf32>
    %87 = arith.addf %68, %86 : vector<4x256xf32>
    %88 = vector.broadcast %3 : vector<4x1xf32> to vector<4x256xf32>
    %89 = arith.addf %87, %88 : vector<4x256xf32>
    %cst_22 = arith.constant 0.000000e+00 : f32
    %90 = vector.broadcast %cst_22 : f32 to vector<4x256xf32>
    %91 = arith.maximumf %89, %90 : vector<4x256xf32>
    %92 = vector.extract_strided_slice %4 {offsets = [0, 0], sizes = [8, 1], strides = [1, 1]} : vector<8x4xf32> to vector<8x1xf32>
    %93 = vector.extract_strided_slice %91 {offsets = [0, 0], sizes = [1, 256], strides = [1, 1]} : vector<4x256xf32> to vector<1x256xf32>
    %94 = vector.broadcast %92 : vector<8x1xf32> to vector<8x256xf32>
    %95 = vector.broadcast %93 : vector<1x256xf32> to vector<8x256xf32>
    %96 = arith.mulf %94, %95 : vector<8x256xf32>
    %97 = vector.extract_strided_slice %4 {offsets = [0, 1], sizes = [8, 1], strides = [1, 1]} : vector<8x4xf32> to vector<8x1xf32>
    %98 = vector.extract_strided_slice %91 {offsets = [1, 0], sizes = [1, 256], strides = [1, 1]} : vector<4x256xf32> to vector<1x256xf32>
    %99 = vector.broadcast %97 : vector<8x1xf32> to vector<8x256xf32>
    %100 = vector.broadcast %98 : vector<1x256xf32> to vector<8x256xf32>
    %101 = arith.mulf %99, %100 : vector<8x256xf32>
    %102 = arith.addf %96, %101 : vector<8x256xf32>
    %103 = vector.extract_strided_slice %4 {offsets = [0, 2], sizes = [8, 1], strides = [1, 1]} : vector<8x4xf32> to vector<8x1xf32>
    %104 = vector.extract_strided_slice %91 {offsets = [2, 0], sizes = [1, 256], strides = [1, 1]} : vector<4x256xf32> to vector<1x256xf32>
    %105 = vector.broadcast %103 : vector<8x1xf32> to vector<8x256xf32>
    %106 = vector.broadcast %104 : vector<1x256xf32> to vector<8x256xf32>
    %107 = arith.mulf %105, %106 : vector<8x256xf32>
    %108 = arith.addf %102, %107 : vector<8x256xf32>
    %109 = vector.extract_strided_slice %4 {offsets = [0, 3], sizes = [8, 1], strides = [1, 1]} : vector<8x4xf32> to vector<8x1xf32>
    %110 = vector.extract_strided_slice %91 {offsets = [3, 0], sizes = [1, 256], strides = [1, 1]} : vector<4x256xf32> to vector<1x256xf32>
    %111 = vector.broadcast %109 : vector<8x1xf32> to vector<8x256xf32>
    %112 = vector.broadcast %110 : vector<1x256xf32> to vector<8x256xf32>
    %113 = arith.mulf %111, %112 : vector<8x256xf32>
    %114 = arith.addf %108, %113 : vector<8x256xf32>
    %115 = vector.broadcast %5 : vector<8x1xf32> to vector<8x256xf32>
    %116 = arith.addf %114, %115 : vector<8x256xf32>
    %cst_23 = arith.constant 0.000000e+00 : f32
    %117 = vector.broadcast %cst_23 : f32 to vector<8x256xf32>
    %118 = arith.maximumf %116, %117 : vector<8x256xf32>
    %c0_24 = arith.constant 0 : index
    %c0_25 = arith.constant 0 : index
    %c0_26 = arith.constant 0 : index
    %119 = vector.load %arg6[%c0_24, %c0_25, %c0_26] : memref<1x8x256xf32, #tpu.memory_space<vmem>>, vector<1x8x256xf32>
    %120 = vector.shape_cast %119 : vector<1x8x256xf32> to vector<8x256xf32>
    %121 = vector.shape_cast %118 : vector<8x256xf32> to vector<1x8x256xf32>
    tpu.vector_store %arg6[%c0_24, %c0_25, %c0_26], %121 {strides = array<i32>} : memref<1x8x256xf32, #tpu.memory_space<vmem>>, vector<1x8x256xf32>,
    return
  }
  func.func @transform_0(%arg0: i32) -> (i32, i32, i32) {
    %c0_i32 = arith.constant 0 : i32
    %c0_i32_0 = arith.constant 0 : i32
    %c0_i32_1 = arith.constant 0 : i32
    return %arg0, %c0_i32, %c0_i32_0 : i32, i32, i32
  }
  func.func @transform_1(%arg0: i32) -> (i32, i32) {
    %c0_i32 = arith.constant 0 : i32
    %c0_i32_0 = arith.constant 0 : i32
    %c0_i32_1 = arith.constant 0 : i32
    return %c0_i32, %c0_i32_0 : i32, i32
  }
  func.func @transform_2(%arg0: i32) -> (i32, i32) {
    %c0_i32 = arith.constant 0 : i32
    %c0_i32_0 = arith.constant 0 : i32
    %c0_i32_1 = arith.constant 0 : i32
    return %c0_i32, %c0_i32_0 : i32, i32
  }
  func.func @transform_3(%arg0: i32) -> (i32, i32) {
    %c0_i32 = arith.constant 0 : i32
    %c0_i32_0 = arith.constant 0 : i32
    %c0_i32_1 = arith.constant 0 : i32
    return %c0_i32, %c0_i32_0 : i32, i32
  }
  func.func @transform_4(%arg0: i32) -> (i32, i32) {
    %c0_i32 = arith.constant 0 : i32
    %c0_i32_0 = arith.constant 0 : i32
    %c0_i32_1 = arith.constant 0 : i32
    return %c0_i32, %c0_i32_0 : i32, i32
  }
  func.func @transform_5(%arg0: i32) -> (i32, i32, i32) {
    %c0_i32 = arith.constant 0 : i32
    %c0_i32_0 = arith.constant 0 : i32
    %c0_i32_1 = arith.constant 0 : i32
    return %arg0, %c0_i32, %c0_i32_0 : i32, i32, i32
  }
}

</mosaic_0001>

<llo_original>
// kernel: tpu_custom_call.1
$region0: #{tpu_custom_call.1}
  #allocation0 [shape = 'u32[]', space=smem, size = 0x4, offset = 0x4, fixed_abs, tag = 'smem constant byte address 0x4 - core index']
  #allocation1 [shape = 'u32[144,128]{1,0:T(1,128)}', space=vmem, size = 0x12000, scoped, tag = 'internal scratch']
  %s0 = inlined_call_operand.vmem [shape: f32[2,4,256], index: 0, kind: input, shape index: {}]
  %s1 = inlined_call_operand.vmem [shape: f32[4,9], index: 1, kind: input, shape index: {}]
  %s2 = inlined_call_operand.vmem [shape: f32[4,1], index: 2, kind: input, shape index: {}]
  %s3 = inlined_call_operand.vmem [shape: f32[8,4], index: 3, kind: input, shape index: {}]
  %s4 = inlined_call_operand.vmem [shape: f32[8,1], index: 4, kind: input, shape index: {}]
  %s5 = inlined_call_operand.hbm [shape: f32[2,8,256], index: 5, kind: output, shape index: {}]
  %s6 = sld [smem:[#allocation0]]
  $region53: #{tpu_custom_call.1} parent=0
    _
  %s8 = ssub.s32 1, %s6
  %s9 = scalar_select 0, %s8, %s6
  $region1: #{tpu_custom_call.1} parent=0
    #allocation2 [shape = 'u8[16384]{0}', space=vmem, size = 0x4000, scoped, tag = 'output window, operand 0']
    #allocation3 [shape = 's32[2]{0}', space=sflag, size = 0x8, scoped, tag = 'scoped memory for tpu_custom_call.1']
    %10 = vsyncpa [#allocation3], 0
    %s11 = scalar_lea.sflag [#allocation3], 1
    %12 = vsyncpa %s11, 0
    loop: start=0, step=1, limit=4
    $region2: #{tpu_custom_call.1} parent=1 // loop_pre_header
      _
    $region3: #{tpu_custom_call.1} parent=1 // loop_header
      %s14 = sphi 0, %s18
      %p15 = scmp.ge.s32.totalorder %s14, 4
      %s24 = sphi 0, %s26
      %s27 = sphi 0, %s24
      %s28 = sphi 0, %s27
      %s44 = sphi 0, %s28
      %s48 = sphi 0, %s48
      %s50 = sphi 0, %s48
      %s51 = sphi 0, %s50
      %s65 = sphi 0, %s51
      %s69 = sphi 0, %s69
      %s71 = sphi 0, %s69
      %s72 = sphi 0, %s71
      %s86 = sphi 0, %s72
      %s90 = sphi 0, %s90
      %s92 = sphi 0, %s90
      %s93 = sphi 0, %s92
      %s107 = sphi 0, %s93
      %s111 = sphi 0, %s111
      %s113 = sphi 0, %s111
      %s114 = sphi 0, %s113
      %s128 = sphi 0, %s114
      %s134 = sphi 0, %s136
      %s137 = sphi 0, %s134
      %s138 = sphi 0, %s137
      %s154 = sphi 0, %s138
    $region4: #{tpu_custom_call.1} parent=1 // loop_header_branch
      %17 = sbr.rel (%p15) target = $region8
    $region5: #{tpu_custom_call.1} parent=1 // loop_body
      %s19 = ssub.s32 %s14, 1
      %s20 = ssub.s32 %s14, 2
      %s21 = sadd.s32 %s14, 1
      %s22 = ssub.s32 %s14, %s21
      %p23 = scmp.eq.s32.totalorder %s22, 0
      %s25 = sadd.s32 %s24, 1
      %s26 = scalar_select %p23, %s24, %s25
      %p29 = pneg %p23
      %p30 = scmp.eq.s32.totalorder %s14, 1
      %p31 = por %p29, %p30
      %p32 = scmp.ne.s32.totalorder %s24, %s27
      %p33 = scmp.eq.s32.totalorder %s14, 0
      %p34 = por %p32, %p33
      %p35 = scmp.ne.s32.totalorder %s24, %s27
      %p36 = scmp.eq.s32.totalorder %s19, 1
      %p37 = por %p35, %p36
      %p38 = scmp.ne.s32.totalorder %s27, %s28
      %p39 = scmp.eq.s32.totalorder %s19, 0
      %p40 = por %p38, %p39
      %p41 = scmp.ne.s32.totalorder %s27, %s28
      %p42 = scmp.eq.s32.totalorder %s20, 1
      %p43 = por %p41, %p42
      %p45 = scmp.ne.s32.totalorder %s28, %s44
      %p46 = scmp.eq.s32.totalorder %s20, 0
      %p47 = por %p45, %p46
      %s49 = sadd.s32 %s48, 1
      %p52 = scmp.eq.s32.totalorder %s14, 1
      %p53 = scmp.ne.s32.totalorder %s48, %s50
      %p54 = scmp.eq.s32.totalorder %s14, 0
      %p55 = por %p53, %p54
      %p56 = scmp.ne.s32.totalorder %s48, %s50
      %p57 = scmp.eq.s32.totalorder %s19, 1
      %p58 = por %p56, %p57
      %p59 = scmp.ne.s32.totalorder %s50, %s51
      %p60 = scmp.eq.s32.totalorder %s19, 0
      %p61 = por %p59, %p60
      %p62 = scmp.ne.s32.totalorder %s50, %s51
      %p63 = scmp.eq.s32.totalorder %s20, 1
      %p64 = por %p62, %p63
      %p66 = scmp.ne.s32.totalorder %s51, %s65
      %p67 = scmp.eq.s32.totalorder %s20, 0
      %p68 = por %p66, %p67
      %s70 = sadd.s32 %s69, 1
      %p73 = scmp.eq.s32.totalorder %s14, 1
      %p74 = scmp.ne.s32.totalorder %s69, %s71
      %p75 = scmp.eq.s32.totalorder %s14, 0
      %p76 = por %p74, %p75
      %p77 = scmp.ne.s32.totalorder %s69, %s71
      %p78 = scmp.eq.s32.totalorder %s19, 1
      %p79 = por %p77, %p78
      %p80 = scmp.ne.s32.totalorder %s71, %s72
      %p81 = scmp.eq.s32.totalorder %s19, 0
      %p82 = por %p80, %p81
      %p83 = scmp.ne.s32.totalorder %s71, %s72
      %p84 = scmp.eq.s32.totalorder %s20, 1
      %p85 = por %p83, %p84
      %p87 = scmp.ne.s32.totalorder %s72, %s86
      %p88 = scmp.eq.s32.totalorder %s20, 0
      %p89 = por %p87, %p88
      %s91 = sadd.s32 %s90, 1
      %p94 = scmp.eq.s32.totalorder %s14, 1
      %p95 = scmp.ne.s32.totalorder %s90, %s92
      %p96 = scmp.eq.s32.totalorder %s14, 0
      %p97 = por %p95, %p96
      %p98 = scmp.ne.s32.totalorder %s90, %s92
      %p99 = scmp.eq.s32.totalorder %s19, 1
      %p100 = por %p98, %p99
      %p101 = scmp.ne.s32.totalorder %s92, %s93
      %p102 = scmp.eq.s32.totalorder %s19, 0
      %p103 = por %p101, %p102
      %p104 = scmp.ne.s32.totalorder %s92, %s93
      %p105 = scmp.eq.s32.totalorder %s20, 1
      %p106 = por %p104, %p105
      %p108 = scmp.ne.s32.totalorder %s93, %s107
      %p109 = scmp.eq.s32.totalorder %s20, 0
      %p110 = por %p108, %p109
      %s112 = sadd.s32 %s111, 1
      %p115 = scmp.eq.s32.totalorder %s14, 1
      %p116 = scmp.ne.s32.totalorder %s111, %s113
      %p117 = scmp.eq.s32.totalorder %s14, 0
      %p118 = por %p116, %p117
      %p119 = scmp.ne.s32.totalorder %s111, %s113
      %p120 = scmp.eq.s32.totalorder %s19, 1
      %p121 = por %p119, %p120
      %p122 = scmp.ne.s32.totalorder %s113, %s114
      %p123 = scmp.eq.s32.totalorder %s19, 0
      %p124 = por %p122, %p123
      %p125 = scmp.ne.s32.totalorder %s113, %s114
      %p126 = scmp.eq.s32.totalorder %s20, 1
      %p127 = por %p125, %p126
      %p129 = scmp.ne.s32.totalorder %s114, %s128
      %p130 = scmp.eq.s32.totalorder %s20, 0
      %p131 = por %p129, %p130
      %s132 = ssub.s32 %s14, %s21
      %p133 = scmp.eq.s32.totalorder %s132, 0
      %s135 = sadd.s32 %s134, 1
      %s136 = scalar_select %p133, %s134, %s135
      %p139 = pneg %p133
      %p140 = scmp.eq.s32.totalorder %s14, 1
      %p141 = por %p139, %p140
      %p142 = scmp.ne.s32.totalorder %s134, %s137
      %p143 = scmp.eq.s32.totalorder %s14, 0
      %p144 = por %p142, %p143
      %p145 = scmp.ne.s32.totalorder %s134, %s137
      %p146 = scmp.eq.s32.totalorder %s19, 1
      %p147 = por %p145, %p146
      %p148 = scmp.ne.s32.totalorder %s137, %s138
      %p149 = scmp.eq.s32.totalorder %s19, 0
      %p150 = por %p148, %p149
      %p151 = scmp.ne.s32.totalorder %s137, %s138
      %p152 = scmp.eq.s32.totalorder %s20, 1
      %p153 = por %p151, %p152
      %p155 = scmp.ne.s32.totalorder %s138, %s154
      %p156 = scmp.eq.s32.totalorder %s20, 0
      %p157 = por %p155, %p156
      %p158 = scmp.le.s32.totalorder 1, %s14
      %p159 = scmp.lt.s32.totalorder %s14, 3
      %p160 = pnand %p158, %p159
      %p161 = pneg %p160
      // Predicated region
      $region9: #{tpu_custom_call.1} parent=5 // pred_check
        _
      $region10: #{tpu_custom_call.1} parent=5 // pred_check_branch
        %163 = sbr.rel (%p160) target = $region12
      $region11: #{tpu_custom_call.1} parent=5 // pred_region
        %s164 = ssub.s32 %s14, 1
        // Predicated region
        $region13: #{tpu_custom_call.1} parent=11 // pred_check
          %p165 = pneg %p61
        $region14: #{tpu_custom_call.1} parent=11 // pred_check_branch
          %167 = sbr.rel (%p165) target = $region16
        $region15: #{tpu_custom_call.1} parent=11 // pred_region
          _
        $region16: #{tpu_custom_call.1} parent=11 // pred_fallthru
          _
        // Predicated region
        $region17: #{tpu_custom_call.1} parent=11 // pred_check
          %p168 = pneg %p82
        $region18: #{tpu_custom_call.1} parent=11 // pred_check_branch
          %170 = sbr.rel (%p168) target = $region20
        $region19: #{tpu_custom_call.1} parent=11 // pred_region
          _
        $region20: #{tpu_custom_call.1} parent=11 // pred_fallthru
          _
        // Predicated region
        $region21: #{tpu_custom_call.1} parent=11 // pred_check
          %p171 = pneg %p103
        $region22: #{tpu_custom_call.1} parent=11 // pred_check_branch
          %173 = sbr.rel (%p171) target = $region24
        $region23: #{tpu_custom_call.1} parent=11 // pred_region
          _
        $region24: #{tpu_custom_call.1} parent=11 // pred_fallthru
          _
        // Predicated region
        $region25: #{tpu_custom_call.1} parent=11 // pred_check
          %p174 = pneg %p124
        $region26: #{tpu_custom_call.1} parent=11 // pred_check_branch
          %176 = sbr.rel (%p174) target = $region28
        $region27: #{tpu_custom_call.1} parent=11 // pred_region
          _
        $region28: #{tpu_custom_call.1} parent=11 // pred_fallthru
          _
      $region12: #{tpu_custom_call.1} parent=5 // pred_fallthru
        _
      %p177 = scmp.lt.s32.totalorder %s14, 2
      // Predicated region
      $region29: #{tpu_custom_call.1} parent=5 // pred_check
        %p178 = pneg %p177
      $region30: #{tpu_custom_call.1} parent=5 // pred_check_branch
        %180 = sbr.rel (%p178) target = $region32
      $region31: #{tpu_custom_call.1} parent=5 // pred_region
        // Predicated region
        $region33: #{tpu_custom_call.1} parent=31 // pred_check
          %p181 = pneg %p34
        $region34: #{tpu_custom_call.1} parent=31 // pred_check_branch
          %183 = sbr.rel (%p181) target = $region36
        $region35: #{tpu_custom_call.1} parent=31 // pred_region
          %p184 = scmp.lt.s32.totalorder %s14, 1
          %s185 = scalar_select %p184, %s14, 1
          %s186 = smul.addr %s185, 2
          %s187 = smul.addr %s186, 4
          %s188 = scalar_lea.vmem %s0, %s187
        $region36: #{tpu_custom_call.1} parent=31 // pred_fallthru
          _
      $region32: #{tpu_custom_call.1} parent=5 // pred_fallthru
        _
      %p189 = scmp.le.s32.totalorder 1, %s14
      %p190 = scmp.lt.s32.totalorder %s14, 3
      %p191 = pnand %p189, %p190
      %p192 = pneg %p191
      // Predicated region
      $region37: #{tpu_custom_call.1} parent=5 // pred_check
        _
      $region38: #{tpu_custom_call.1} parent=5 // pred_check_branch
        %194 = sbr.rel (%p191) target = $region40
      $region39: #{tpu_custom_call.1} parent=5 // pred_region
        %s195 = ssub.s32 %s14, 1
        %p196 = scmp.lt.s32.totalorder %s19, 1
        %s197 = scalar_select %p196, %s19, 1
        %s198 = smul.addr %s197, 2
        %s199 = smul.addr %s198, 4
        %s200 = scalar_lea.vmem %s0, %s199
        %p201 = pneg %p40
        %p202 = pneg %p37
        %p203 = pneg %p61
        %p204 = pneg %p58
        %p205 = pneg %p82
        %p206 = pneg %p79
        %p207 = pneg %p103
        %p208 = pneg %p100
        %p209 = pneg %p124
        %p210 = pneg %p121
        %p211 = pneg %p150
        %p212 = pneg %p147
        %s213 = sand.u32 %s137, 1
        %s214 = scalar_lea.sflag [#allocation3], %s213
        %s215 = sand.u32 %s137, 1
        %s216 = smul.addr %s215, 16
        %s217 = scalar_lea.vmem [#allocation2], %s216
        %p218 = scmp.lt.s32.totalorder %s19, 1
        %s219 = scalar_select %p218, %s19, 1
        %s220 = smul.addr %s219, 2
        %s221 = smul.addr %s220, 4
        %s222 = scalar_lea.vmem %s0, %s221
        %v223 = vld [vmem:[%s222] sm:$0xff]
        %v224 = vld [vmem:[%s1] sm:$0xf]
        %v225 = vld [vmem:[%s2] sm:$0xf]
        %v226 = vld [vmem:[%s3] sm:$0xff]
        %v227 = vld [vmem:[%s4] sm:$0xff]
        %v228 = vlaneseq
        %v229 = vand.u32 %v228, 127
        %v230 = vadd.s32 %v229, 128
        %vm231 = vcmp.lt.s32.totalorder %v229, 0
        %v232 = vsub.s32 0, %v229
        %v233 = vsel %vm231, %v232, %v229
        %v234 = vshrl.u32 %v233, 4
        %v235 = vand.u32 %v233, 15
        %v236 = vsub.s32 0, %v235
        %v237 = vsel %vm231, %v236, %v235
        %vm238 = vcmp.lt.s32.totalorder %v230, 0
        %v239 = vsub.s32 0, %v230
        %v240 = vsel %vm238, %v239, %v230
        %v241 = vshrl.u32 %v240, 4
        %v242 = vand.u32 %v240, 15
        %v243 = vsub.s32 0, %v242
        %v244 = vsel %vm238, %v243, %v242
        %vm245 = vcmp.ne.s32.totalorder %v237, 0
        %vm246 = vcmp.ne.s32.totalorder %v244, 0
        %vm247 = vcmp.lt.s32.totalorder %v237, 0
        %vm248 = vcmp.lt.s32.totalorder %v244, 0
        %vm249 = vmand %vm247, %vm245
        %vm250 = vmand %vm248, %vm246
        %v251 = vadd.s32 %v237, 16
        %v252 = vadd.s32 %v244, 16
        %v253 = vsel %vm249, %v251, %v237
        %v254 = vsel %vm250, %v252, %v244
        %v256 = vcombine.high %v223, %v223
        %258 = vrot.lane.b32.xlu0 %v223, 1
        %v259 = vpop.permute.xlu0 %258
        %260 = vrot.lane.b32.xlu0 %v256, 1
        %v261 = vpop.permute.xlu0 %260
        %vm262 = vcmp.lt.s32.totalorder %v229, 1
        %v263 = vsel %vm262, %v259, %v261
        %v264 = vsel %vm262, %v261, %v259
        %vm265 = vcmp.ge.s32.totalorder %v253, 1
        %vm266 = vcmp.ge.s32.totalorder %v254, 1
        %v267 = vsel %vm265, 1, 0
        %v268 = vsel %vm266, 1, 0
        %vm269 = vcmp.eq.s32.totalorder %v267, 1
        %vm270 = vcmp.eq.s32.totalorder %v268, 1
        %v271 = vsel %vm269, %v264, 0.0
        %v272 = vsel %vm270, %v263, 0.0
        %273 = vrot.lane.b32.xlu0 %v223, 127
        %v274 = vpop.permute.xlu0 %273
        %275 = vrot.lane.b32.xlu0 %v256, 127
        %v276 = vpop.permute.xlu0 %275
        %vm277 = vcmp.lt.s32.totalorder %v229, 127
        %v278 = vsel %vm277, %v274, %v276
        %v279 = vsel %vm277, %v276, %v274
        %vm280 = vcmp.lt.s32.totalorder %v253, 15
        %vm281 = vcmp.lt.s32.totalorder %v254, 15
        %v282 = vsel %vm280, 1, 0
        %v283 = vsel %vm281, 1, 0
        %vm284 = vcmp.eq.s32.totalorder %v282, 1
        %vm285 = vcmp.eq.s32.totalorder %v283, 1
        %v286 = vsel %vm284, %v278, 0.0
        %v287 = vsel %vm285, %v279, 0.0
        %289 = vset.pattern.permute.xlu0 0
        %290 = vperm.xlu0 %289, %v224
        %v291 = vpop.permute.xlu0 %290
        %v293 = vmul.f32 %v291, %v271
        %v294 = vmul.f32 %v291, %v272
        %295 = vset.pattern.permute.xlu0 1
        %296 = vperm.xlu0 %295, %v224
        %v297 = vpop.permute.xlu0 %296
        %v299 = vmul.f32 %v297, %v223
        %v300 = vmul.f32 %v297, %v256
        %v301 = vadd.f32 %v293, %v299
        %v302 = vadd.f32 %v294, %v300
        %303 = vset.pattern.permute.xlu0 2
        %304 = vperm.xlu0 %303, %v224
        %v305 = vpop.permute.xlu0 %304
        %v307 = vmul.f32 %v305, %v286
        %v308 = vmul.f32 %v305, %v287
        %v309 = vadd.f32 %v301, %v307
        %v310 = vadd.f32 %v302, %v308
        %311 = vrot.lane.b32.xlu0 %v309, 16
        %v312 = vpop.permute.xlu0 %311
        %313 = vrot.lane.b32.xlu0 %v310, 16
        %v314 = vpop.permute.xlu0 %313
        %vm315 = vcmp.lt.s32.totalorder %v229, 16
        %v316 = vsel %vm315, %v312, %v314
        %v317 = vsel %vm315, %v314, %v312
        %vm318 = vcmp.ge.s32.totalorder %v229, 16
        %vm319 = vcmp.ge.s32.totalorder %v230, 16
        %v320 = vsel %vm318, 1, 0
        %v321 = vsel %vm319, 1, 0
        %vm322 = vcmp.eq.s32.totalorder %v320, 1
        %vm323 = vcmp.eq.s32.totalorder %v321, 1
        %v324 = vsel %vm322, %v317, 0.0
        %v325 = vsel %vm323, %v316, 0.0
        %v326 = vadd.f32 %v324, 0.0
        %v327 = vadd.f32 %v325, 0.0
        %328 = vset.pattern.permute.xlu0 3
        %329 = vperm.xlu0 %328, %v224
        %v330 = vpop.permute.xlu0 %329
        %v332 = vmul.f32 %v330, %v271
        %v333 = vmul.f32 %v330, %v272
        %334 = vset.pattern.permute.xlu0 4
        %335 = vperm.xlu0 %334, %v224
        %v336 = vpop.permute.xlu0 %335
        %v338 = vmul.f32 %v336, %v223
        %v339 = vmul.f32 %v336, %v256
        %v340 = vadd.f32 %v332, %v338
        %v341 = vadd.f32 %v333, %v339
        %342 = vset.pattern.permute.xlu0 5
        %343 = vperm.xlu0 %342, %v224
        %v344 = vpop.permute.xlu0 %343
        %v346 = vmul.f32 %v344, %v286
        %v347 = vmul.f32 %v344, %v287
        %v348 = vadd.f32 %v340, %v346
        %v349 = vadd.f32 %v341, %v347
        %v350 = vadd.f32 %v326, %v348
        %v351 = vadd.f32 %v327, %v349
        %352 = vset.pattern.permute.xlu0 6
        %353 = vperm.xlu0 %352, %v224
        %v354 = vpop.permute.xlu0 %353
        %v356 = vmul.f32 %v354, %v271
        %v357 = vmul.f32 %v354, %v272
        %358 = vset.pattern.permute.xlu0 7
        %359 = vperm.xlu0 %358, %v224
        %v360 = vpop.permute.xlu0 %359
        %v362 = vmul.f32 %v360, %v223
        %v363 = vmul.f32 %v360, %v256
        %v364 = vadd.f32 %v356, %v362
        %v365 = vadd.f32 %v357, %v363
        %366 = vset.pattern.permute.xlu0 8
        %367 = vperm.xlu0 %366, %v224
        %v368 = vpop.permute.xlu0 %367
        %v370 = vmul.f32 %v368, %v286
        %v371 = vmul.f32 %v368, %v287
        %v372 = vadd.f32 %v364, %v370
        %v373 = vadd.f32 %v365, %v371
        %374 = vrot.lane.b32.xlu0 %v372, 112
        %v375 = vpop.permute.xlu0 %374
        %376 = vrot.lane.b32.xlu0 %v373, 112
        %v377 = vpop.permute.xlu0 %376
        %vm378 = vcmp.lt.s32.totalorder %v229, 112
        %v379 = vsel %vm378, %v375, %v377
        %v380 = vsel %vm378, %v377, %v375
        %vm381 = vcmp.lt.s32.totalorder %v229, 240
        %vm382 = vcmp.lt.s32.totalorder %v230, 240
        %v383 = vsel %vm381, 1, 0
        %v384 = vsel %vm382, 1, 0
        %vm385 = vcmp.eq.s32.totalorder %v383, 1
        %vm386 = vcmp.eq.s32.totalorder %v384, 1
        %v387 = vsel %vm385, %v379, 0.0
        %v388 = vsel %vm386, %v380, 0.0
        %v389 = vadd.f32 %v350, %v387
        %v390 = vadd.f32 %v351, %v388
        %392 = vset.pattern.permute.xlu0 0
        %393 = vperm.xlu0 %392, %v225
        %v394 = vpop.permute.xlu0 %393
        %v396 = vadd.f32 %v389, %v394
        %v397 = vadd.f32 %v390, %v394
        %v398 = vmax.f32 %v396, 0.0
        %v399 = vmax.f32 %v397, 0.0
        %401 = vset.pattern.permute.xlu0 0
        %402 = vperm.xlu0 %401, %v226
        %v403 = vpop.permute.xlu0 %402
        %v405 = vlaneseq
        %v406 = vshrl.u32 %v405, 7
        %v407 = vsub.s32 0, %v406
        %v408 = vrot.slane %v398, %v407
        %v409 = vlaneseq
        %v410 = vshrl.u32 %v409, 7
        %v411 = vsub.s32 0, %v410
        %v412 = vrot.slane %v399, %v411
        %v413 = vmul.f32 %v403, %v408
        %v414 = vmul.f32 %v403, %v412
        %415 = vset.pattern.permute.xlu0 1
        %416 = vperm.xlu0 %415, %v226
        %v417 = vpop.permute.xlu0 %416
        %v419 = vlaneseq
        %v420 = vshrl.u32 %v419, 7
        %v421 = vsub.s32 1, %v420
        %v422 = vrot.slane %v398, %v421
        %v423 = vlaneseq
        %v424 = vshrl.u32 %v423, 7
        %v425 = vsub.s32 1, %v424
        %v426 = vrot.slane %v399, %v425
        %v427 = vmul.f32 %v417, %v422
        %v428 = vmul.f32 %v417, %v426
        %v429 = vadd.f32 %v413, %v427
        %v430 = vadd.f32 %v414, %v428
        %431 = vset.pattern.permute.xlu0 2
        %432 = vperm.xlu0 %431, %v226
        %v433 = vpop.permute.xlu0 %432
        %v435 = vlaneseq
        %v436 = vshrl.u32 %v435, 7
        %v437 = vsub.s32 2, %v436
        %v438 = vrot.slane %v398, %v437
        %v439 = vlaneseq
        %v440 = vshrl.u32 %v439, 7
        %v441 = vsub.s32 2, %v440
        %v442 = vrot.slane %v399, %v441
        %v443 = vmul.f32 %v433, %v438
        %v444 = vmul.f32 %v433, %v442
        %v445 = vadd.f32 %v429, %v443
        %v446 = vadd.f32 %v430, %v444
        %447 = vset.pattern.permute.xlu0 3
        %448 = vperm.xlu0 %447, %v226
        %v449 = vpop.permute.xlu0 %448
        %v451 = vlaneseq
        %v452 = vshrl.u32 %v451, 7
        %v453 = vsub.s32 3, %v452
        %v454 = vrot.slane %v398, %v453
        %v455 = vlaneseq
        %v456 = vshrl.u32 %v455, 7
        %v457 = vsub.s32 3, %v456
        %v458 = vrot.slane %v399, %v457
        %v459 = vmul.f32 %v449, %v454
        %v460 = vmul.f32 %v449, %v458
        %v461 = vadd.f32 %v445, %v459
        %v462 = vadd.f32 %v446, %v460
        %464 = vset.pattern.permute.xlu0 0
        %465 = vperm.xlu0 %464, %v227
        %v466 = vpop.permute.xlu0 %465
        %v468 = vadd.f32 %v461, %v466
        %v469 = vadd.f32 %v462, %v466
        %v470 = vmax.f32 %v468, 0.0
        %v471 = vmax.f32 %v469, 0.0
        %472 = vst [vmem:[%s217] sm:$0xff] %v470
        %473 = vst [vmem:[%s217 + $0x8] sm:$0xff] %v471
        %s474 = sand.u32 %s137, 1
        %s475 = scalar_lea.sflag [#allocation3], %s474
        %s476 = sand.u32 %s137, 1
        %s477 = smul.addr %s476, 16
        %s478 = scalar_lea.vmem [#allocation2], %s477
        // Predicated region
        $region41: #{tpu_custom_call.1} parent=39 // pred_check
          %p479 = pneg %p147
        $region42: #{tpu_custom_call.1} parent=39 // pred_check_branch
          %481 = sbr.rel (%p479) target = $region44
        $region43: #{tpu_custom_call.1} parent=39 // pred_region
          %s483 = ssub.s32 256, 256
          %484 = vsyncadd %s475, %s483
          %s485 = smul.addr %s19, 2
          %s486 = smul.addr %s485, 128
          %s487 = scalar_lea.hbm %s5, %s486
          %s489 = sshll.u32 %s478, 4
          %s490 = int_to_ptr.vmem [resolvable:$true] %s489
          %492 = dma.vmem_to_hbm [thread:$0]  %s490, 256, %s487, %s475
        $region44: #{tpu_custom_call.1} parent=39 // pred_fallthru
          _
      $region40: #{tpu_custom_call.1} parent=5 // pred_fallthru
        _
      %p493 = scmp.le.s32.totalorder 2, %s14
      // Predicated region
      $region45: #{tpu_custom_call.1} parent=5 // pred_check
        %p494 = pneg %p493
      $region46: #{tpu_custom_call.1} parent=5 // pred_check_branch
        %496 = sbr.rel (%p494) target = $region48
      $region47: #{tpu_custom_call.1} parent=5 // pred_region
        %s497 = ssub.s32 %s14, 2
        // Predicated region
        $region49: #{tpu_custom_call.1} parent=47 // pred_check
          %p498 = pneg %p153
        $region50: #{tpu_custom_call.1} parent=47 // pred_check_branch
          %500 = sbr.rel (%p498) target = $region52
        $region51: #{tpu_custom_call.1} parent=47 // pred_region
          %s501 = sand.u32 %s138, 1
          %s502 = scalar_lea.sflag [#allocation3], %s501
          %s503 = sand.u32 %s138, 1
          %s504 = smul.addr %s503, 16
          %s505 = scalar_lea.vmem [#allocation2], %s504
          %506 = dma.done %s502, 256
        $region52: #{tpu_custom_call.1} parent=47 // pred_fallthru
          _
      $region48: #{tpu_custom_call.1} parent=5 // pred_fallthru
        _
    $region6: #{tpu_custom_call.1} parent=1 // loop_footer
      %s18 = sadd.s32 1, %s14
    $region7: #{tpu_custom_call.1} parent=1 // loop_footer_branch
      %13 = sbr.rel target = $region3
    $region8: #{tpu_custom_call.1} parent=1 // loop_exit
      _
    %507 = vsyncpa [#allocation3], 1
    %s508 = scalar_lea.sflag [#allocation3], 1
    %509 = vsyncpa %s508, 1

</llo_original>
